<compile_context>
chip_gen: v6e
topology: v6e:2x2x1
jax: 0.10.0
libtpu: 0.0.40
codegen_flags: <defaults>
</compile_context>

<pallas_src>
import jax
import jax.numpy as jnp
from jax.experimental import pallas as pl
from jax.experimental.pallas import tpu as pltpu


def _view_noop_kernel(x_ref, o_ref):
    # `view` is a metadata-only reinterpretation.  The output HBM buffer is
    # the input HBM buffer (input_output_aliases={0: 0}), so there is nothing
    # to read, compute, or write: the body is intentionally empty.
    del x_ref, o_ref


def pallas_reshape(x, shape):
    """torch.Tensor.view(shape) semantics via an aliased no-op Pallas call.

    The pallas_call keeps both refs in pl.ANY (HBM), declares the output as an
    alias of the input, and has an empty body -> zero HBM traffic inside the
    kernel.  The surrounding reshapes are pure metadata (row-major bitcasts)
    inside the enclosing jit.

    NOTE: to realize actual zero-copy end to end, the caller's jit must donate
    `x` (donate_argnums); without donation, XLA inserts exactly one defensive
    copy of `x` to satisfy the alias.
    """
    if x.size == 0:
        # Degenerate empty tensor: nothing to alias, metadata reshape only.
        return jnp.reshape(x, shape)

    passthrough = pl.pallas_call(
        _view_noop_kernel,
        out_shape=jax.ShapeDtypeStruct(x.shape, x.dtype),
        in_specs=[pl.BlockSpec(memory_space=pl.ANY)],
        out_specs=pl.BlockSpec(memory_space=pl.ANY),
        input_output_aliases={0: 0},
        compiler_params=pltpu.CompilerParams(has_side_effects=True),
    )
    y = passthrough(x)
    # Row-major metadata reshape of the aliased buffer (bitcast in XLA).
    return jnp.reshape(y, shape)


class Reshape:
    """JAX/Pallas analogue of the PyTorch Reshape module (x.view(shape)).

    donate_input=True  -> true zero-copy view: the output reuses x's HBM
                          buffer; x must not be used afterwards (move-style).
    donate_input=False -> x stays valid (PyTorch-like); XLA inserts a single
                          defensive copy to satisfy the kernel's alias.
    """

    def __init__(self, *args, donate_input=False):
        # Allow both Reshape(2, 1024) and Reshape((2, 1024)).
        if len(args) == 1 and isinstance(args[0], (tuple, list)):
            args = tuple(args[0])
        self.shape = tuple(args)
        self._fn = jax.jit(
            lambda x: pallas_reshape(x, self.shape),
            donate_argnums=(0,) if donate_input else (),
        )

    def __call__(self, x):
        return self._fn(x)


if __name__ == "__main__":
    key = jax.random.PRNGKey(0)
    k0, k1 = jax.random.split(key)

    # Typical VAE usage: flatten NCHW feature maps to (batch, features).
    x = jax.random.normal(k0, (2, 4, 16, 16), dtype=jnp.float32)
    target_shape = (2, 4 * 16 * 16)
    mod = Reshape(*target_shape)          # default: x stays valid afterwards
    y = jax.block_until_ready(mod(x))
    ref = jnp.reshape(x, target_shape)
    assert y.shape == target_shape
    assert y.dtype == x.dtype
    assert bool(jnp.all(y == ref))

    # Ragged (non-multiple-of-8*128) size: previously needed pad + slice,
    # now handled directly by the no-op aliased kernel.
    x2 = jax.random.normal(k1, (3, 5, 7), dtype=jnp.float32)
    mod2 = Reshape(7, 15)
    y2 = jax.block_until_ready(mod2(x2))
    ref2 = jnp.reshape(x2, (7, 15))
    assert y2.shape == (7, 15)
    assert bool(jnp.all(y2 == ref2))

    print("KERNEL_OK")
</pallas_src>

<mosaic_0001>
module attributes {stable_mosaic.version = 11 : i64} {
  func.func @_view_noop_kernel(%arg0: memref<2x4x16x16xf32, #tpu.memory_space<any>>, %arg1: memref<2x4x16x16xf32, #tpu.memory_space<any>>) attributes {dimension_semantics = [], scalar_prefetch = 0 : i64, scratch_operands = 0 : i64, tpu.core_type = #tpu.core_type<tc>} {
    return
  }
}

</mosaic_0001>

<llo_original>
// kernel: _lambda_.1
$region0: #{_lambda_.1}
  #allocation0 [shape = 'u32[]', space=smem, size = 0x4, offset = 0x4, fixed_abs, tag = 'smem constant byte address 0x4 - core index']
  #allocation1 [shape = 'u32[144,128]{1,0:T(1,128)}', space=vmem, size = 0x12000, scoped, tag = 'internal scratch']
  %s0 = inlined_call_operand.vmem [shape: f32[2,4,16,16], index: 0, kind: input, shape index: {}, may-alias: {0,1}]
  %s1 = inlined_call_operand.vmem [shape: f32[2,4,16,16], index: 1, kind: output, shape index: {}, may-alias: {0,1}]
  %s2 = sld [smem:[#allocation0]]
  $region2: #{_lambda_.1} parent=0
    _
  %s4 = ssub.s32 1, %s2
  %s5 = scalar_select 0, %s4, %s2

</llo_original>
